<compile_context>
chip_gen: v5e
topology: v5e:2x2
jax: 0.10.0
libtpu: 0.0.40
codegen_flags: <defaults>
</compile_context>

<pallas_src>
import jax
import jax.numpy as jnp
from jax.experimental import pallas as pl
from jax.experimental.pallas import tpu as pltpu


def _attn_kernel(g_ref, x_ref, kk_ref, wg_ref, wx_ref, b_ref, wpsi_ref,
                 bpsi_ref, o_ref):
    # Gating 1x1 convs (BN folded) as two MXU matmuls over resident weights,
    # f32 accumulation.  The kernel is HBM-bandwidth bound, so MXU/VPU slack
    # is huge and f32 operands cost nothing extra in wall-clock.
    a = jnp.dot(wg_ref[...], g_ref[...], preferred_element_type=jnp.float32)
    a = a + jnp.dot(wx_ref[...], x_ref[...], preferred_element_type=jnp.float32)
    a = jnp.maximum(a + b_ref[...], 0.0)                  # fused bias + ReLU
    # psi conv (F_int -> 1): VPU multiply + cross-sublane reduce (XLU slot),
    # sigmoid on the EUP, scalar bias from SMEM.  All free next to the DMA.
    p = jnp.sum(a * wpsi_ref[...], axis=0, keepdims=True) + bpsi_ref[0]
    psi = jax.nn.sigmoid(p)                               # (1, tile_p) f32
    # out = kk * psi, broadcast over channels; lane-dense store.
    o_ref[...] = (kk_ref[...] * psi).astype(o_ref.dtype)


def _round_up(a, b):
    return (a + b - 1) // b * b


def _cdiv(a, b):
    return (a + b - 1) // b


def _vmem_capacity_bytes():
    try:
        return int(pltpu.get_tpu_info().vmem_capacity_bytes)
    except Exception:
        return 64 << 20   # conservative default (v7x per-TensorCore)


def attention_block_pallas(g3, x3, kk3, wg_t, wx_t, b_col, wpsi_col, bpsi,
                           *, tile_p=4096):
    """Inputs in (N, C, P) layout (P = H*W); weights pre-folded (eval BN)."""
    N, F_g, P = g3.shape
    _, F_l, _ = x3.shape
    F_int = wg_t.shape[0]
    itemsize = 4  # f32 streaming end-to-end

    # ---- generation-aware VMEM budget ------------------------------------
    phys = _vmem_capacity_bytes()
    # <= ~56 MiB compiler limit on the 64 MiB v7x part, up to ~100 MiB on
    # 128 MiB v5e/v6e; leave headroom for Mosaic internal scratch.
    vmem_cap = max(24 << 20, min(phys - (8 << 20), 100 << 20))
    budget = vmem_cap - (6 << 20)

    resident = 2 * (F_int * (F_g + F_l) + 2 * F_int) * itemsize  # weights (dbl-buf)

    def _vmem_need(tp):
        stream = (F_g + 3 * F_l) * tp * itemsize     # g + x + kk in, out
        inter = 2 * F_int * tp * 4                   # f32 intermediates
        return 2 * stream + resident + inter + (2 << 20)

    # ---- tile_p: largest lane tile (multiple of 128) fitting the budget ---
    per_lane = 2 * (F_g + 3 * F_l) * itemsize + 2 * F_int * 4
    tp_budget = (budget - resident - (2 << 20)) // max(per_lane, 1)
    tp_budget = max(128, (tp_budget // 128) * 128)

    P128 = _round_up(P, 128)
    tile_p = max(128, (int(tile_p) // 128) * 128)
    tile_p = min(tile_p, tp_budget, P128)
    if tile_p >= P:
        tile_p = P                  # full-dim block: always legal, no padding
    # v7x megacore: keep >= 2 total grid steps so both TensorCores get work.
    if N * _cdiv(P, tile_p) < 2:
        half = _round_up(_cdiv(P, 2), 128)
        if 128 <= half < P:
            tile_p = half

    grid = (N, _cdiv(P, tile_p))
    vmem_limit = int(min(max(_vmem_need(tile_p), 32 << 20), vmem_cap))

    full = lambda n, i: (0, 0)      # resident weights: same block every step
    out3 = pl.pallas_call(
        _attn_kernel,
        out_shape=jax.ShapeDtypeStruct((N, F_l, P), kk3.dtype),
        grid_spec=pltpu.PrefetchScalarGridSpec(
            num_scalar_prefetch=0,
            grid=grid,
            in_specs=[
                # batch axis squeezed out of the kernel view (block dim None)
                pl.BlockSpec((None, F_g, tile_p), lambda n, i: (n, 0, i)),  # g
                pl.BlockSpec((None, F_l, tile_p), lambda n, i: (n, 0, i)),  # x
                pl.BlockSpec((None, F_l, tile_p), lambda n, i: (n, 0, i)),  # kk
                pl.BlockSpec((F_int, F_g), full),   # folded W_g   (resident)
                pl.BlockSpec((F_int, F_l), full),   # folded W_x   (resident)
                pl.BlockSpec((F_int, 1), full),     # fused bias   (resident)
                pl.BlockSpec((F_int, 1), full),     # folded w_psi (resident)
                pl.BlockSpec(memory_space=pltpu.MemorySpace.SMEM),  # b_psi
            ],
            out_specs=pl.BlockSpec((None, F_l, tile_p), lambda n, i: (n, 0, i)),
        ),
        compiler_params=pltpu.CompilerParams(
            dimension_semantics=("parallel", "parallel"),
            vmem_limit_bytes=vmem_limit),
    )(g3, x3, kk3, wg_t, wx_t, b_col, wpsi_col, bpsi)
    return out3


def _fold_conv_bn(w, b, gamma, beta, mean, var, eps=1e-5):
    """Fold Conv1x1 (Cin,Cout) + bias with BatchNorm (eval) into W', b'."""
    s = gamma / jnp.sqrt(var + eps)             # (Cout,)
    w_f = w * s[None, :]                        # (Cin, Cout)
    b_f = (b - mean) * s + beta                 # (Cout,)
    return w_f, b_f


def attention_block(g, x, kk, params, *, tile_p=4096):
    """g: (N,F_g,H,W), x/kk: (N,F_l,H,W) NCHW float32 -> (N,F_l,H,W)."""
    N, F_g, H, W = g.shape
    _, F_l, _, _ = x.shape

    # Fold BN (eval mode) into the 1x1 convs; fuse the two gating biases.
    wg_f, bg_f = _fold_conv_bn(params["wg"], params["bg"],
                               params["g_gamma"], params["g_beta"],
                               params["g_mean"], params["g_var"])
    wx_f, bx_f = _fold_conv_bn(params["wx"], params["bx"],
                               params["x_gamma"], params["x_beta"],
                               params["x_mean"], params["x_var"])
    wpsi_f, bpsi_f = _fold_conv_bn(params["wpsi"], params["bpsi"],
                                   params["p_gamma"], params["p_beta"],
                                   params["p_mean"], params["p_var"])

    wg_t = wg_f.T.astype(jnp.float32)                 # (F_int, F_g) resident
    wx_t = wx_f.T.astype(jnp.float32)                 # (F_int, F_l) resident
    b_col = (bg_f + bx_f).reshape(-1, 1).astype(jnp.float32)
    wpsi_col = wpsi_f.reshape(-1, 1).astype(jnp.float32)
    bpsi = bpsi_f.reshape(1).astype(jnp.float32)

    # Free reshapes only — no transpose / concat / cast / pad HBM passes.
    g3 = g.reshape(N, F_g, H * W)
    x3 = x.reshape(N, F_l, H * W)
    kk3 = kk.reshape(N, F_l, H * W)

    out3 = attention_block_pallas(g3, x3, kk3, wg_t, wx_t, b_col, wpsi_col,
                                  bpsi, tile_p=tile_p)
    return out3.reshape(N, F_l, H, W)


def _init_params(key, F_g, F_l, F_int):
    ks = jax.random.split(key, 6)
    return {
        # conv weights stored as (Cin, Cout) matrices (kernel_size=1)
        "wg": 0.1 * jax.random.normal(ks[0], (F_g, F_int), jnp.float32),
        "bg": 0.02 * jax.random.normal(ks[1], (F_int,), jnp.float32),
        "wx": 0.1 * jax.random.normal(ks[2], (F_l, F_int), jnp.float32),
        "bx": 0.02 * jax.random.normal(ks[3], (F_int,), jnp.float32),
        "wpsi": 0.1 * jax.random.normal(ks[4], (F_int, 1), jnp.float32),
        "bpsi": 0.02 * jax.random.normal(ks[5], (1,), jnp.float32),
        # BatchNorm params / running stats (deterministic, non-trivial)
        "g_gamma": 1.0 + 0.05 * jnp.arange(F_int, dtype=jnp.float32),
        "g_beta": 0.01 * jnp.arange(F_int, dtype=jnp.float32),
        "g_mean": 0.02 * jnp.arange(F_int, dtype=jnp.float32),
        "g_var": 1.0 + 0.1 * jnp.arange(F_int, dtype=jnp.float32),
        "x_gamma": 1.0 - 0.03 * jnp.arange(F_int, dtype=jnp.float32),
        "x_beta": -0.01 * jnp.arange(F_int, dtype=jnp.float32),
        "x_mean": -0.02 * jnp.arange(F_int, dtype=jnp.float32),
        "x_var": 1.0 + 0.05 * jnp.arange(F_int, dtype=jnp.float32),
        "p_gamma": jnp.array([1.1], jnp.float32),
        "p_beta": jnp.array([0.05], jnp.float32),
        "p_mean": jnp.array([0.01], jnp.float32),
        "p_var": jnp.array([1.2], jnp.float32),
    }


def _reference(g, x, kk, params, eps=1e-5):
    """Pure-JAX reference (NCHW, eval-mode BN)."""
    def conv_bn(t, w, b, gamma, beta, mean, var):
        y = jnp.einsum("nchw,cf->nfhw", t, w) + b[None, :, None, None]
        s = gamma / jnp.sqrt(var + eps)
        return (y - mean[None, :, None, None]) * s[None, :, None, None] \
            + beta[None, :, None, None]
    g1 = conv_bn(g, params["wg"], params["bg"], params["g_gamma"],
                 params["g_beta"], params["g_mean"], params["g_var"])
    x1 = conv_bn(x, params["wx"], params["bx"], params["x_gamma"],
                 params["x_beta"], params["x_mean"], params["x_var"])
    a = jax.nn.relu(g1 + x1)
    p = conv_bn(a, params["wpsi"], params["bpsi"], params["p_gamma"],
                params["p_beta"], params["p_mean"], params["p_var"])
    return kk * jax.nn.sigmoid(p)


if __name__ == "__main__":
    N, F_g, F_l, F_int, H, W = 2, 4, 4, 8, 16, 16
    key = jax.random.PRNGKey(0)
    k1, k2, k3, kp = jax.random.split(key, 4)

    g = jax.random.normal(k1, (N, F_g, H, W), jnp.float32)
    x = jax.random.normal(k2, (N, F_l, H, W), jnp.float32)
    kk = jax.random.normal(k3, (N, F_l, H, W), jnp.float32)
    params = _init_params(kp, F_g, F_l, F_int)

    out = attention_block(g, x, kk, params)
    out = jax.block_until_ready(out)

    ref = _reference(g, x, kk, params)
    assert out.shape == (N, F_l, H, W)
    # f32 streaming with MXU default-precision dots -> small error margin.
    assert jnp.allclose(out, ref, atol=1e-2, rtol=1e-2), \
        float(jnp.max(jnp.abs(out - ref)))

    print("KERNEL_OK")
</pallas_src>

<mosaic_0001>
module attributes {stable_mosaic.version = 11 : i64} {
  func.func @_attn_kernel(%arg0: i32, %arg1: i32, %arg2: memref<1x4x256xf32, #tpu.memory_space<vmem>>, %arg3: memref<1x4x256xf32, #tpu.memory_space<vmem>>, %arg4: memref<1x4x256xf32, #tpu.memory_space<vmem>>, %arg5: memref<8x4xf32, #tpu.memory_space<vmem>>, %arg6: memref<8x4xf32, #tpu.memory_space<vmem>>, %arg7: memref<8x1xf32, #tpu.memory_space<vmem>>, %arg8: memref<8x1xf32, #tpu.memory_space<vmem>>, %arg9: memref<1xf32, #tpu.memory_space<smem>>, %arg10: memref<1x4x256xf32, #tpu.memory_space<vmem>>) attributes {dimension_semantics = [#tpu.dimension_semantics<parallel>, #tpu.dimension_semantics<parallel>], iteration_bounds = array<i64: 2, 1>, scalar_prefetch = 0 : i64, scratch_operands = 0 : i64, tpu.core_type = #tpu.core_type<tc>, window_params = [{transform_indices = @transform_0, window_bounds = array<i64: 1, 4, 256>}, {transform_indices = @transform_1, window_bounds = array<i64: 1, 4, 256>}, {transform_indices = @transform_2, window_bounds = array<i64: 1, 4, 256>}, {pipeline_mode = #tpu.pipeline_mode<synchronous>, transform_indices = @transform_3, window_bounds = array<i64: 8, 4>}, {pipeline_mode = #tpu.pipeline_mode<synchronous>, transform_indices = @transform_4, window_bounds = array<i64: 8, 4>}, {pipeline_mode = #tpu.pipeline_mode<synchronous>, transform_indices = @transform_5, window_bounds = array<i64: 8, 1>}, {pipeline_mode = #tpu.pipeline_mode<synchronous>, transform_indices = @transform_6, window_bounds = array<i64: 8, 1>}, {transform_indices = @transform_7, window_bounds = array<i64: 1>}, {transform_indices = @transform_8, window_bounds = array<i64: 1, 4, 256>}]} {
    %c0 = arith.constant 0 : index
    %c0_0 = arith.constant 0 : index
    %0 = vector.load %arg5[%c0, %c0_0] : memref<8x4xf32, #tpu.memory_space<vmem>>, vector<8x4xf32>
    %c0_1 = arith.constant 0 : index
    %c0_2 = arith.constant 0 : index
    %c0_3 = arith.constant 0 : index
    %1 = vector.load %arg2[%c0_1, %c0_2, %c0_3] : memref<1x4x256xf32, #tpu.memory_space<vmem>>, vector<1x4x256xf32>
    %2 = vector.shape_cast %1 : vector<1x4x256xf32> to vector<4x256xf32>
    %cst = arith.constant dense<0.000000e+00> : vector<8x256xf32>
    %3 = tpu.matmul %0, %2, %cst {dimension_numbers = #tpu.dot_dimension_numbers<[1], [0], [0], [1], [0, 0, 1, 1], [], []>} : vector<8x4xf32>, vector<4x256xf32>, vector<8x256xf32> -> vector<8x256xf32>
    %c0_4 = arith.constant 0 : index
    %c0_5 = arith.constant 0 : index
    %4 = vector.load %arg6[%c0_4, %c0_5] : memref<8x4xf32, #tpu.memory_space<vmem>>, vector<8x4xf32>
    %c0_6 = arith.constant 0 : index
    %c0_7 = arith.constant 0 : index
    %c0_8 = arith.constant 0 : index
    %5 = vector.load %arg3[%c0_6, %c0_7, %c0_8] : memref<1x4x256xf32, #tpu.memory_space<vmem>>, vector<1x4x256xf32>
    %6 = vector.shape_cast %5 : vector<1x4x256xf32> to vector<4x256xf32>
    %cst_9 = arith.constant dense<0.000000e+00> : vector<8x256xf32>
    %7 = tpu.matmul %4, %6, %cst_9 {dimension_numbers = #tpu.dot_dimension_numbers<[1], [0], [0], [1], [0, 0, 1, 1], [], []>} : vector<8x4xf32>, vector<4x256xf32>, vector<8x256xf32> -> vector<8x256xf32>
    %8 = arith.addf %3, %7 : vector<8x256xf32>
    %c0_10 = arith.constant 0 : index
    %c0_11 = arith.constant 0 : index
    %9 = vector.load %arg7[%c0_10, %c0_11] : memref<8x1xf32, #tpu.memory_space<vmem>>, vector<8x1xf32>
    %10 = vector.broadcast %9 : vector<8x1xf32> to vector<8x256xf32>
    %11 = arith.addf %8, %10 : vector<8x256xf32>
    %cst_12 = arith.constant 0.000000e+00 : f32
    %12 = vector.broadcast %cst_12 : f32 to vector<8x256xf32>
    %13 = arith.maximumf %11, %12 : vector<8x256xf32>
    %c0_13 = arith.constant 0 : index
    %c0_14 = arith.constant 0 : index
    %14 = vector.load %arg8[%c0_13, %c0_14] : memref<8x1xf32, #tpu.memory_space<vmem>>, vector<8x1xf32>
    %15 = vector.broadcast %14 : vector<8x1xf32> to vector<8x256xf32>
    %16 = arith.mulf %13, %15 : vector<8x256xf32>
    %cst_15 = arith.constant dense<0.000000e+00> : vector<256xf32>
    %17 = vector.multi_reduction <add>, %16, %cst_15 [0] : vector<8x256xf32> to vector<256xf32>
    %18 = vector.shape_cast %17 : vector<256xf32> to vector<1x256xf32>
    %c0_16 = arith.constant 0 : index
    %19 = memref.load %arg9[%c0_16] : memref<1xf32, #tpu.memory_space<smem>>
    %20 = vector.broadcast %19 : f32 to vector<1x256xf32>
    %21 = arith.addf %18, %20 : vector<1x256xf32>
    %22 = arith.negf %21 : vector<1x256xf32>
    %23 = math.exp %22 : vector<1x256xf32>
    %cst_17 = arith.constant 1.000000e+00 : f32
    %24 = vector.broadcast %cst_17 : f32 to vector<1x256xf32>
    %25 = arith.addf %24, %23 : vector<1x256xf32>
    %26 = arith.divf %24, %25 : vector<1x256xf32>
    %c0_18 = arith.constant 0 : index
    %c0_19 = arith.constant 0 : index
    %c0_20 = arith.constant 0 : index
    %27 = vector.load %arg4[%c0_18, %c0_19, %c0_20] : memref<1x4x256xf32, #tpu.memory_space<vmem>>, vector<1x4x256xf32>
    %28 = vector.shape_cast %27 : vector<1x4x256xf32> to vector<4x256xf32>
    %29 = vector.broadcast %26 : vector<1x256xf32> to vector<4x256xf32>
    %30 = arith.mulf %28, %29 : vector<4x256xf32>
    %c0_21 = arith.constant 0 : index
    %c0_22 = arith.constant 0 : index
    %c0_23 = arith.constant 0 : index
    %31 = vector.load %arg10[%c0_21, %c0_22, %c0_23] : memref<1x4x256xf32, #tpu.memory_space<vmem>>, vector<1x4x256xf32>
    %32 = vector.shape_cast %31 : vector<1x4x256xf32> to vector<4x256xf32>
    %33 = vector.shape_cast %30 : vector<4x256xf32> to vector<1x4x256xf32>
    tpu.vector_store %arg10[%c0_21, %c0_22, %c0_23], %33 {strides = array<i32>} : memref<1x4x256xf32, #tpu.memory_space<vmem>>, vector<1x4x256xf32>,
    return
  }
  func.func @transform_0(%arg0: i32, %arg1: i32) -> (i32, i32, i32) {
    %c0_i32 = arith.constant 0 : i32
    %c0_i32_0 = arith.constant 0 : i32
    return %arg0, %c0_i32, %arg1 : i32, i32, i32
  }
  func.func @transform_1(%arg0: i32, %arg1: i32) -> (i32, i32, i32) {
    %c0_i32 = arith.constant 0 : i32
    %c0_i32_0 = arith.constant 0 : i32
    return %arg0, %c0_i32, %arg1 : i32, i32, i32
  }
  func.func @transform_2(%arg0: i32, %arg1: i32) -> (i32, i32, i32) {
    %c0_i32 = arith.constant 0 : i32
    %c0_i32_0 = arith.constant 0 : i32
    return %arg0, %c0_i32, %arg1 : i32, i32, i32
  }
  func.func @transform_3(%arg0: i32, %arg1: i32) -> (i32, i32) {
    %c0_i32 = arith.constant 0 : i32
    %c0_i32_0 = arith.constant 0 : i32
    %c0_i32_1 = arith.constant 0 : i32
    return %c0_i32, %c0_i32_0 : i32, i32
  }
  func.func @transform_4(%arg0: i32, %arg1: i32) -> (i32, i32) {
    %c0_i32 = arith.constant 0 : i32
    %c0_i32_0 = arith.constant 0 : i32
    %c0_i32_1 = arith.constant 0 : i32
    return %c0_i32, %c0_i32_0 : i32, i32
  }
  func.func @transform_5(%arg0: i32, %arg1: i32) -> (i32, i32) {
    %c0_i32 = arith.constant 0 : i32
    %c0_i32_0 = arith.constant 0 : i32
    %c0_i32_1 = arith.constant 0 : i32
    return %c0_i32, %c0_i32_0 : i32, i32
  }
  func.func @transform_6(%arg0: i32, %arg1: i32) -> (i32, i32) {
    %c0_i32 = arith.constant 0 : i32
    %c0_i32_0 = arith.constant 0 : i32
    %c0_i32_1 = arith.constant 0 : i32
    return %c0_i32, %c0_i32_0 : i32, i32
  }
  func.func @transform_7(%arg0: i32, %arg1: i32) -> i32 {
    %c0_i32 = arith.constant 0 : i32
    %c0_i32_0 = arith.constant 0 : i32
    return %c0_i32 : i32
  }
  func.func @transform_8(%arg0: i32, %arg1: i32) -> (i32, i32, i32) {
    %c0_i32 = arith.constant 0 : i32
    %c0_i32_0 = arith.constant 0 : i32
    return %arg0, %c0_i32, %arg1 : i32, i32, i32
  }
}

</mosaic_0001>

<llo_original>
// kernel: tpu_custom_call.1
$region0: #{tpu_custom_call.1}
  #allocation0 [shape = 'u32[]', space=smem, size = 0x4, offset = 0x4, fixed_abs, tag = 'smem constant byte address 0x4 - core index']
  #allocation1 [shape = 'u32[72,128]{1,0:T(1,128)}', space=vmem, size = 0x9000, scoped, tag = 'internal scratch']
  #allocation2 [shape = 'f32[1]{0:T(128)S(6)}', space=smem, size = 0x200, scoped, tag = 'scoped memory for tpu_custom_call.1']
  %s0 = inlined_call_operand.vmem [shape: f32[2,4,256], index: 0, kind: input, shape index: {}]
  %s1 = inlined_call_operand.hbm [shape: f32[2,4,256], index: 1, kind: input, shape index: {}]
  %s2 = inlined_call_operand.hbm [shape: f32[2,4,256], index: 2, kind: input, shape index: {}]
  %s3 = inlined_call_operand.vmem [shape: f32[8,4], index: 3, kind: input, shape index: {}]
  %s4 = inlined_call_operand.vmem [shape: f32[8,4], index: 4, kind: input, shape index: {}]
  %s5 = inlined_call_operand.vmem [shape: f32[8,1], index: 5, kind: input, shape index: {}]
  %s6 = inlined_call_operand.vmem [shape: f32[8,1], index: 6, kind: input, shape index: {}]
  %s7 = inlined_call_operand.<no memory space> [shape: f32[1], index: 7, kind: input, shape index: {}]
  %s8 = inlined_call_operand.hbm [shape: f32[2,4,256], index: 8, kind: output, shape index: {}]
  %s9 = sld [smem:[#allocation0]]
  $region73: #{tpu_custom_call.1} parent=0
    _
  %s11 = ssub.s32 1, %s9
  %s12 = scalar_select 0, %s11, %s9
  %13 = sst [smem:[#allocation2]] %s7
  $region1: #{tpu_custom_call.1} parent=0
    #allocation3 [shape = 'u8[8192]{0}', space=vmem, size = 0x2000, scoped, tag = 'input window, operand 1']
    #allocation4 [shape = 's32[2]{0}', space=sflag, size = 0x8, scoped, tag = 'scoped memory for tpu_custom_call.1']
    #allocation5 [shape = 's32[2]{0}', space=sflag, size = 0x8, scoped, tag = 'scoped memory for tpu_custom_call.1']
    #allocation6 [shape = 'u8[8192]{0}', space=vmem, size = 0x2000, scoped, tag = 'input window, operand 2']
    #allocation7 [shape = 's32[2]{0}', space=sflag, size = 0x8, scoped, tag = 'scoped memory for tpu_custom_call.1']
    #allocation8 [shape = 'u8[8192]{0}', space=vmem, size = 0x2000, scoped, tag = 'output window, operand 0']
    %14 = vsyncpa [#allocation4], 0
    %s15 = scalar_lea.sflag [#allocation4], 1
    %16 = vsyncpa %s15, 0
    %17 = vsyncpa [#allocation7], 0
    %s18 = scalar_lea.sflag [#allocation7], 1
    %19 = vsyncpa %s18, 0
    %20 = vsyncpa [#allocation5], 0
    %s21 = scalar_lea.sflag [#allocation5], 1
    %22 = vsyncpa %s21, 0
    loop: start=0, step=1, limit=4
    $region2: #{tpu_custom_call.1} parent=1 // loop_pre_header
      _
    $region3: #{tpu_custom_call.1} parent=1 // loop_header
      %s24 = sphi 0, %s28
      %p25 = scmp.ge.s32.totalorder %s24, 4
      %s31 = sphi 0, %s43
      %s32 = sphi 0, %s39
      %s33 = sphi 0, %s31
      %s34 = sphi 0, %s32
      %s35 = sphi 0, %s33
      %s36 = sphi 0, %s34
      %s48 = sphi 0, %s50
      %s51 = sphi 0, %s48
      %s52 = sphi 0, %s51
      %s68 = sphi 0, %s52
      %s76 = sphi 0, %s78
      %s79 = sphi 0, %s76
      %s80 = sphi 0, %s79
      %s96 = sphi 0, %s80
      %s104 = sphi 0, %s106
      %s107 = sphi 0, %s104
      %s108 = sphi 0, %s107
      %s124 = sphi 0, %s108
      %s128 = sphi 0, %s128
      %s130 = sphi 0, %s128
      %s131 = sphi 0, %s130
      %s145 = sphi 0, %s131
      %s149 = sphi 0, %s149
      %s151 = sphi 0, %s149
      %s152 = sphi 0, %s151
      %s166 = sphi 0, %s152
      %s170 = sphi 0, %s170
      %s172 = sphi 0, %s170
      %s173 = sphi 0, %s172
      %s187 = sphi 0, %s173
      %s191 = sphi 0, %s191
      %s193 = sphi 0, %s191
      %s194 = sphi 0, %s193
      %s208 = sphi 0, %s194
      %s212 = sphi 0, %s212
      %s214 = sphi 0, %s212
      %s215 = sphi 0, %s214
      %s229 = sphi 0, %s215
      %s237 = sphi 0, %s239
      %s240 = sphi 0, %s237
      %s241 = sphi 0, %s240
      %s257 = sphi 0, %s241
    $region4: #{tpu_custom_call.1} parent=1 // loop_header_branch
      %27 = sbr.rel (%p25) target = $region8
    $region5: #{tpu_custom_call.1} parent=1 // loop_body
      %s29 = ssub.s32 %s24, 1
      %s30 = ssub.s32 %s24, 2
      %s37 = sadd.s32 1, %s32
      %p38 = scmp.ge.s32.totalorder %s37, 1
      %s39 = scalar_select %p38, 0, %s37
      %s40 = sadd.s32 1, %s31
      %s41 = scalar_select %p38, %s40, %s31
      %p42 = scmp.ge.s32.totalorder %s41, 2
      %s43 = scalar_select %p42, 0, %s41
      %s44 = ssub.s32 %s31, %s43
      %s45 = ssub.s32 %s32, %s39
      %s46 = sor.u32 %s44, %s45
      %p47 = scmp.eq.s32.totalorder %s46, 0
      %s49 = sadd.s32 %s48, 1
      %s50 = scalar_select %p47, %s48, %s49
      %p53 = pneg %p47
      %p54 = scmp.eq.s32.totalorder %s24, 1
      %p55 = por %p53, %p54
      %p56 = scmp.ne.s32.totalorder %s48, %s51
      %p57 = scmp.eq.s32.totalorder %s24, 0
      %p58 = por %p56, %p57
      %p59 = scmp.ne.s32.totalorder %s48, %s51
      %p60 = scmp.eq.s32.totalorder %s29, 1
      %p61 = por %p59, %p60
      %p62 = scmp.ne.s32.totalorder %s51, %s52
      %p63 = scmp.eq.s32.totalorder %s29, 0
      %p64 = por %p62, %p63
      %p65 = scmp.ne.s32.totalorder %s51, %s52
      %p66 = scmp.eq.s32.totalorder %s30, 1
      %p67 = por %p65, %p66
      %p69 = scmp.ne.s32.totalorder %s52, %s68
      %p70 = scmp.eq.s32.totalorder %s30, 0
      %p71 = por %p69, %p70
      %s72 = ssub.s32 %s31, %s43
      %s73 = ssub.s32 %s32, %s39
      %s74 = sor.u32 %s72, %s73
      %p75 = scmp.eq.s32.totalorder %s74, 0
      %s77 = sadd.s32 %s76, 1
      %s78 = scalar_select %p75, %s76, %s77
      %p81 = pneg %p75
      %p82 = scmp.eq.s32.totalorder %s24, 1
      %p83 = por %p81, %p82
      %p84 = scmp.ne.s32.totalorder %s76, %s79
      %p85 = scmp.eq.s32.totalorder %s24, 0
      %p86 = por %p84, %p85
      %p87 = scmp.ne.s32.totalorder %s76, %s79
      %p88 = scmp.eq.s32.totalorder %s29, 1
      %p89 = por %p87, %p88
      %p90 = scmp.ne.s32.totalorder %s79, %s80
      %p91 = scmp.eq.s32.totalorder %s29, 0
      %p92 = por %p90, %p91
      %p93 = scmp.ne.s32.totalorder %s79, %s80
      %p94 = scmp.eq.s32.totalorder %s30, 1
      %p95 = por %p93, %p94
      %p97 = scmp.ne.s32.totalorder %s80, %s96
      %p98 = scmp.eq.s32.totalorder %s30, 0
      %p99 = por %p97, %p98
      %s100 = ssub.s32 %s31, %s43
      %s101 = ssub.s32 %s32, %s39
      %s102 = sor.u32 %s100, %s101
      %p103 = scmp.eq.s32.totalorder %s102, 0
      %s105 = sadd.s32 %s104, 1
      %s106 = scalar_select %p103, %s104, %s105
      %p109 = pneg %p103
      %p110 = scmp.eq.s32.totalorder %s24, 1
      %p111 = por %p109, %p110
      %p112 = scmp.ne.s32.totalorder %s104, %s107
      %p113 = scmp.eq.s32.totalorder %s24, 0
      %p114 = por %p112, %p113
      %p115 = scmp.ne.s32.totalorder %s104, %s107
      %p116 = scmp.eq.s32.totalorder %s29, 1
      %p117 = por %p115, %p116
      %p118 = scmp.ne.s32.totalorder %s107, %s108
      %p119 = scmp.eq.s32.totalorder %s29, 0
      %p120 = por %p118, %p119
      %p121 = scmp.ne.s32.totalorder %s107, %s108
      %p122 = scmp.eq.s32.totalorder %s30, 1
      %p123 = por %p121, %p122
      %p125 = scmp.ne.s32.totalorder %s108, %s124
      %p126 = scmp.eq.s32.totalorder %s30, 0
      %p127 = por %p125, %p126
      %s129 = sadd.s32 %s128, 1
      %p132 = scmp.eq.s32.totalorder %s24, 1
      %p133 = scmp.ne.s32.totalorder %s128, %s130
      %p134 = scmp.eq.s32.totalorder %s24, 0
      %p135 = por %p133, %p134
      %p136 = scmp.ne.s32.totalorder %s128, %s130
      %p137 = scmp.eq.s32.totalorder %s29, 1
      %p138 = por %p136, %p137
      %p139 = scmp.ne.s32.totalorder %s130, %s131
      %p140 = scmp.eq.s32.totalorder %s29, 0
      %p141 = por %p139, %p140
      %p142 = scmp.ne.s32.totalorder %s130, %s131
      %p143 = scmp.eq.s32.totalorder %s30, 1
      %p144 = por %p142, %p143
      %p146 = scmp.ne.s32.totalorder %s131, %s145
      %p147 = scmp.eq.s32.totalorder %s30, 0
      %p148 = por %p146, %p147
      %s150 = sadd.s32 %s149, 1
      %p153 = scmp.eq.s32.totalorder %s24, 1
      %p154 = scmp.ne.s32.totalorder %s149, %s151
      %p155 = scmp.eq.s32.totalorder %s24, 0
      %p156 = por %p154, %p155
      %p157 = scmp.ne.s32.totalorder %s149, %s151
      %p158 = scmp.eq.s32.totalorder %s29, 1
      %p159 = por %p157, %p158
      %p160 = scmp.ne.s32.totalorder %s151, %s152
      %p161 = scmp.eq.s32.totalorder %s29, 0
      %p162 = por %p160, %p161
      %p163 = scmp.ne.s32.totalorder %s151, %s152
      %p164 = scmp.eq.s32.totalorder %s30, 1
      %p165 = por %p163, %p164
      %p167 = scmp.ne.s32.totalorder %s152, %s166
      %p168 = scmp.eq.s32.totalorder %s30, 0
      %p169 = por %p167, %p168
      %s171 = sadd.s32 %s170, 1
      %p174 = scmp.eq.s32.totalorder %s24, 1
      %p175 = scmp.ne.s32.totalorder %s170, %s172
      %p176 = scmp.eq.s32.totalorder %s24, 0
      %p177 = por %p175, %p176
      %p178 = scmp.ne.s32.totalorder %s170, %s172
      %p179 = scmp.eq.s32.totalorder %s29, 1
      %p180 = por %p178, %p179
      %p181 = scmp.ne.s32.totalorder %s172, %s173
      %p182 = scmp.eq.s32.totalorder %s29, 0
      %p183 = por %p181, %p182
      %p184 = scmp.ne.s32.totalorder %s172, %s173
      %p185 = scmp.eq.s32.totalorder %s30, 1
      %p186 = por %p184, %p185
      %p188 = scmp.ne.s32.totalorder %s173, %s187
      %p189 = scmp.eq.s32.totalorder %s30, 0
      %p190 = por %p188, %p189
      %s192 = sadd.s32 %s191, 1
      %p195 = scmp.eq.s32.totalorder %s24, 1
      %p196 = scmp.ne.s32.totalorder %s191, %s193
      %p197 = scmp.eq.s32.totalorder %s24, 0
      %p198 = por %p196, %p197
      %p199 = scmp.ne.s32.totalorder %s191, %s193
      %p200 = scmp.eq.s32.totalorder %s29, 1
      %p201 = por %p199, %p200
      %p202 = scmp.ne.s32.totalorder %s193, %s194
      %p203 = scmp.eq.s32.totalorder %s29, 0
      %p204 = por %p202, %p203
      %p205 = scmp.ne.s32.totalorder %s193, %s194
      %p206 = scmp.eq.s32.totalorder %s30, 1
      %p207 = por %p205, %p206
      %p209 = scmp.ne.s32.totalorder %s194, %s208
      %p210 = scmp.eq.s32.totalorder %s30, 0
      %p211 = por %p209, %p210
      %s213 = sadd.s32 %s212, 1
      %p216 = scmp.eq.s32.totalorder %s24, 1
      %p217 = scmp.ne.s32.totalorder %s212, %s214
      %p218 = scmp.eq.s32.totalorder %s24, 0
      %p219 = por %p217, %p218
      %p220 = scmp.ne.s32.totalorder %s212, %s214
      %p221 = scmp.eq.s32.totalorder %s29, 1
      %p222 = por %p220, %p221
      %p223 = scmp.ne.s32.totalorder %s214, %s215
      %p224 = scmp.eq.s32.totalorder %s29, 0
      %p225 = por %p223, %p224
      %p226 = scmp.ne.s32.totalorder %s214, %s215
      %p227 = scmp.eq.s32.totalorder %s30, 1
      %p228 = por %p226, %p227
      %p230 = scmp.ne.s32.totalorder %s215, %s229
      %p231 = scmp.eq.s32.totalorder %s30, 0
      %p232 = por %p230, %p231
      %s233 = ssub.s32 %s31, %s43
      %s234 = ssub.s32 %s32, %s39
      %s235 = sor.u32 %s233, %s234
      %p236 = scmp.eq.s32.totalorder %s235, 0
      %s238 = sadd.s32 %s237, 1
      %s239 = scalar_select %p236, %s237, %s238
      %p242 = pneg %p236
      %p243 = scmp.eq.s32.totalorder %s24, 1
      %p244 = por %p242, %p243
      %p245 = scmp.ne.s32.totalorder %s237, %s240
      %p246 = scmp.eq.s32.totalorder %s24, 0
      %p247 = por %p245, %p246
      %p248 = scmp.ne.s32.totalorder %s237, %s240
      %p249 = scmp.eq.s32.totalorder %s29, 1
      %p250 = por %p248, %p249
      %p251 = scmp.ne.s32.totalorder %s240, %s241
      %p252 = scmp.eq.s32.totalorder %s29, 0
      %p253 = por %p251, %p252
      %p254 = scmp.ne.s32.totalorder %s240, %s241
      %p255 = scmp.eq.s32.totalorder %s30, 1
      %p256 = por %p254, %p255
      %p258 = scmp.ne.s32.totalorder %s241, %s257
      %p259 = scmp.eq.s32.totalorder %s30, 0
      %p260 = por %p258, %p259
      %p261 = scmp.le.s32.totalorder 1, %s24
      %p262 = scmp.lt.s32.totalorder %s24, 3
      %p263 = pnand %p261, %p262
      %p264 = pneg %p263
      // Predicated region
      $region9: #{tpu_custom_call.1} parent=5 // pred_check
        _
      $region10: #{tpu_custom_call.1} parent=5 // pred_check_branch
        %266 = sbr.rel (%p263) target = $region12
      $region11: #{tpu_custom_call.1} parent=5 // pred_region
        %s267 = ssub.s32 %s24, 1
        // Predicated region
        $region13: #{tpu_custom_call.1} parent=11 // pred_check
          %p268 = pneg %p141
        $region14: #{tpu_custom_call.1} parent=11 // pred_check_branch
          %270 = sbr.rel (%p268) target = $region16
        $region15: #{tpu_custom_call.1} parent=11 // pred_region
          _
        $region16: #{tpu_custom_call.1} parent=11 // pred_fallthru
          _
        // Predicated region
        $region17: #{tpu_custom_call.1} parent=11 // pred_check
          %p271 = pneg %p162
        $region18: #{tpu_custom_call.1} parent=11 // pred_check_branch
          %273 = sbr.rel (%p271) target = $region20
        $region19: #{tpu_custom_call.1} parent=11 // pred_region
          _
        $region20: #{tpu_custom_call.1} parent=11 // pred_fallthru
          _
        // Predicated region
        $region21: #{tpu_custom_call.1} parent=11 // pred_check
          %p274 = pneg %p183
        $region22: #{tpu_custom_call.1} parent=11 // pred_check_branch
          %276 = sbr.rel (%p274) target = $region24
        $region23: #{tpu_custom_call.1} parent=11 // pred_region
          _
        $region24: #{tpu_custom_call.1} parent=11 // pred_fallthru
          _
        // Predicated region
        $region25: #{tpu_custom_call.1} parent=11 // pred_check
          %p277 = pneg %p204
        $region26: #{tpu_custom_call.1} parent=11 // pred_check_branch
          %279 = sbr.rel (%p277) target = $region28
        $region27: #{tpu_custom_call.1} parent=11 // pred_region
          _
        $region28: #{tpu_custom_call.1} parent=11 // pred_fallthru
          _
        // Predicated region
        $region29: #{tpu_custom_call.1} parent=11 // pred_check
          %p280 = pneg %p225
        $region30: #{tpu_custom_call.1} parent=11 // pred_check_branch
          %282 = sbr.rel (%p280) target = $region32
        $region31: #{tpu_custom_call.1} parent=11 // pred_region
          _
        $region32: #{tpu_custom_call.1} parent=11 // pred_fallthru
          _
      $region12: #{tpu_custom_call.1} parent=5 // pred_fallthru
        _
      %p283 = scmp.lt.s32.totalorder %s24, 2
      // Predicated region
      $region33: #{tpu_custom_call.1} parent=5 // pred_check
        %p284 = pneg %p283
      $region34: #{tpu_custom_call.1} parent=5 // pred_check_branch
        %286 = sbr.rel (%p284) target = $region36
      $region35: #{tpu_custom_call.1} parent=5 // pred_region
        // Predicated region
        $region37: #{tpu_custom_call.1} parent=35 // pred_check
          %p287 = pneg %p58
        $region38: #{tpu_custom_call.1} parent=35 // pred_check_branch
          %289 = sbr.rel (%p287) target = $region40
        $region39: #{tpu_custom_call.1} parent=35 // pred_region
          %s290 = smul.u32 2, %s32
          %p291 = scmp.lt.s32.totalorder %s31, 1
          %s292 = scalar_select %p291, %s31, 1
          %p293 = scmp.lt.s32.totalorder %s290, 1
          %s294 = scalar_select %p293, %s290, 1
          %s295 = smul.addr %s292, 2
          %s296 = sadd.s32 %s294, %s295
          %s297 = smul.addr %s296, 4
          %s298 = scalar_lea.vmem %s0, %s297
          %s299 = smul.u32 2, %s32
        $region40: #{tpu_custom_call.1} parent=35 // pred_fallthru
          _
        // Predicated region
        $region41: #{tpu_custom_call.1} parent=35 // pred_check
          %p300 = pneg %p86
        $region42: #{tpu_custom_call.1} parent=35 // pred_check_branch
          %302 = sbr.rel (%p300) target = $region44
        $region43: #{tpu_custom_call.1} parent=35 // pred_region
          %s303 = sand.u32 %s76, 1
          %s304 = scalar_lea.sflag [#allocation4], %s303
          %s305 = sand.u32 %s76, 1
          %s306 = smul.addr %s305, 8
          %s307 = scalar_lea.vmem [#allocation3], %s306
          %s308 = smul.u32 2, %s32
          %310 = vsyncadd %s304, 0
          %s311 = smul.addr %s31, 2
          %s312 = sadd.s32 %s308, %s311
          %s313 = smul.addr %s312, 4
          %s314 = scalar_lea.hbm %s1, %s313
          %s316 = sshll.u32 %s314, 4
          %s317 = int_to_ptr.hbm [resolvable:$true] %s316
          %s318 = sshll.u32 %s307, 4
          %s319 = int_to_ptr.vmem [resolvable:$true] %s318
          %321 = dma.hbm_to_vmem [thread:$0]  %s317, 128, %s319, %s304
        $region44: #{tpu_custom_call.1} parent=35 // pred_fallthru
          _
        // Predicated region
        $region45: #{tpu_custom_call.1} parent=35 // pred_check
          %p322 = pneg %p114
        $region46: #{tpu_custom_call.1} parent=35 // pred_check_branch
          %324 = sbr.rel (%p322) target = $region48
        $region47: #{tpu_custom_call.1} parent=35 // pred_region
          %s325 = sand.u32 %s104, 1
          %s326 = scalar_lea.sflag [#allocation7], %s325
          %s327 = sand.u32 %s104, 1
          %s328 = smul.addr %s327, 8
          %s329 = scalar_lea.vmem [#allocation6], %s328
          %s330 = smul.u32 2, %s32
          %332 = vsyncadd %s326, 0
          %s333 = smul.addr %s31, 2
          %s334 = sadd.s32 %s330, %s333
          %s335 = smul.addr %s334, 4
          %s336 = scalar_lea.hbm %s2, %s335
          %s338 = sshll.u32 %s336, 4
          %s339 = int_to_ptr.hbm [resolvable:$true] %s338
          %s340 = sshll.u32 %s329, 4
          %s341 = int_to_ptr.vmem [resolvable:$true] %s340
          %343 = dma.hbm_to_vmem [thread:$0]  %s339, 128, %s341, %s326
        $region48: #{tpu_custom_call.1} parent=35 // pred_fallthru
          _
      $region36: #{tpu_custom_call.1} parent=5 // pred_fallthru
        _
      %p344 = scmp.le.s32.totalorder 1, %s24
      %p345 = scmp.lt.s32.totalorder %s24, 3
      %p346 = pnand %p344, %p345
      %p347 = pneg %p346
      // Predicated region
      $region49: #{tpu_custom_call.1} parent=5 // pred_check
        _
      $region50: #{tpu_custom_call.1} parent=5 // pred_check_branch
        %349 = sbr.rel (%p346) target = $region52
      $region51: #{tpu_custom_call.1} parent=5 // pred_region
        %s350 = ssub.s32 %s24, 1
        %s351 = sand.u32 %s79, 1
        %s352 = scalar_lea.sflag [#allocation4], %s351
        %s353 = sand.u32 %s79, 1
        %s354 = smul.addr %s353, 8
        %s355 = scalar_lea.vmem [#allocation3], %s354
        // Predicated region
        $region53: #{tpu_custom_call.1} parent=51 // pred_check
          %p356 = pneg %p92
        $region54: #{tpu_custom_call.1} parent=51 // pred_check_branch
          %358 = sbr.rel (%p356) target = $region56
        $region55: #{tpu_custom_call.1} parent=51 // pred_region
          %360 = dma.done %s352, 128
        $region56: #{tpu_custom_call.1} parent=51 // pred_fallthru
          _
        %s361 = sand.u32 %s107, 1
        %s362 = scalar_lea.sflag [#allocation7], %s361
        %s363 = sand.u32 %s107, 1
        %s364 = smul.addr %s363, 8
        %s365 = scalar_lea.vmem [#allocation6], %s364
        // Predicated region
        $region57: #{tpu_custom_call.1} parent=51 // pred_check
          %p366 = pneg %p120
        $region58: #{tpu_custom_call.1} parent=51 // pred_check_branch
          %368 = sbr.rel (%p366) target = $region60
        $region59: #{tpu_custom_call.1} parent=51 // pred_region
          %370 = dma.done %s362, 128
        $region60: #{tpu_custom_call.1} parent=51 // pred_fallthru
          _
        %s371 = smul.u32 2, %s34
        %p372 = scmp.lt.s32.totalorder %s33, 1
        %s373 = scalar_select %p372, %s33, 1
        %p374 = scmp.lt.s32.totalorder %s371, 1
        %s375 = scalar_select %p374, %s371, 1
        %s376 = smul.addr %s373, 2
        %s377 = sadd.s32 %s375, %s376
        %s378 = smul.addr %s377, 4
        %s379 = scalar_lea.vmem %s0, %s378
        %p380 = pneg %p64
        %p381 = pneg %p61
        %s382 = sand.u32 %s79, 1
        %s383 = scalar_lea.sflag [#allocation4], %s382
        %s384 = sand.u32 %s79, 1
        %s385 = smul.addr %s384, 8
        %s386 = scalar_lea.vmem [#allocation3], %s385
        %p387 = pneg %p92
        %p388 = pneg %p89
        %s389 = sand.u32 %s107, 1
        %s390 = scalar_lea.sflag [#allocation7], %s389
        %s391 = sand.u32 %s107, 1
        %s392 = smul.addr %s391, 8
        %s393 = scalar_lea.vmem [#allocation6], %s392
        %p394 = pneg %p120
        %p395 = pneg %p117
        %p396 = pneg %p141
        %p397 = pneg %p138
        %p398 = pneg %p162
        %p399 = pneg %p159
        %p400 = pneg %p183
        %p401 = pneg %p180
        %p402 = pneg %p204
        %p403 = pneg %p201
        %p404 = pneg %p225
        %p405 = pneg %p222
        %p406 = pneg %p253
        %p407 = pneg %p250
        %s408 = sand.u32 %s240, 1
        %s409 = scalar_lea.sflag [#allocation5], %s408
        %s410 = sand.u32 %s240, 1
        %s411 = smul.addr %s410, 8
        %s412 = scalar_lea.vmem [#allocation8], %s411
        %s413 = smul.u32 2, %s34
        %p414 = scmp.lt.s32.totalorder %s33, 1
        %s415 = scalar_select %p414, %s33, 1
        %p416 = scmp.lt.s32.totalorder %s413, 1
        %s417 = scalar_select %p416, %s413, 1
        %s418 = smul.addr %s415, 2
        %s419 = sadd.s32 %s417, %s418
        %s420 = smul.addr %s419, 4
        %s421 = scalar_lea.vmem %s0, %s420
        %s422 = smul.u32 2, %s34
        %s423 = smul.u32 2, %s34
        %s424 = smul.u32 2, %s34
        %s425 = smul.u32 2, %s34
        %v426 = vld [vmem:[%s3] sm:$0xff]
        %v427 = vld [vmem:[%s421] sm:$0xff]
        %v428 = vld [vmem:[%s4] sm:$0xff]
        %v429 = vld [vmem:[%s355] sm:$0xff]
        %431 = vst [vmem:[#allocation1] ss:$2 sm:$0xff] %v429
        %v432 = vld.sshfl [vmem:[#allocation1] sm:$0xff pattern:$0x75316420]
        %v433 = vld.sshfl [vmem:[#allocation1 + $0x8] sm:$0xff pattern:$0x75316420]
        %vm434 = vcmask 31744
        %v436 = vsel %vm434, %v428, 0
        %vm438 = vcmask 1043456
        %v439 = vsel %vm438, %v432, 0
        %v441 = vsel %vm438, %v433, 0
        %443 = vmatpush.msra.mxu0 0.0
        %444 = vmatpush.msra.mxu0 0.0
        %445 = vmatpush.msra.mxu0 0.0
        %446 = vmatpush.msra.mxu0 0.0
        %447 = vmatpush.msra.mxu0 0.0
        %448 = vmatpush.msra.mxu0 0.0
        %449 = vmatpush.msra.mxu0 0.0
        %450 = vmatpush.msra.mxu0 0.0
        %451 = vmatpush.msra.mxu0 0.0
        %452 = vmatpush.msra.mxu0 0.0
        %453 = vmatpush.msra.mxu0 0.0
        %454 = vmatpush.msra.mxu0 0.0
        %455 = vmatpush.msra.mxu0 0.0
        %456 = vmatpush.msra.mxu0 0.0
        %457 = vmatpush.msra.mxu0 0.0
        %458 = vmatpush.msra.mxu0 %v439
        %459 = vmatmul.f32.gmra.mxu0 %v436
        %v460 = vpop.f32.mrf.mxu0
        %v461 = vadd.f32 0.0, %v460
        %462 = vdwg.mxu0
        %463 = vmatpush.msra.mxu0 0.0
        %464 = vmatpush.msra.mxu0 0.0
        %465 = vmatpush.msra.mxu0 0.0
        %466 = vmatpush.msra.mxu0 0.0
        %467 = vmatpush.msra.mxu0 0.0
        %468 = vmatpush.msra.mxu0 0.0
        %469 = vmatpush.msra.mxu0 0.0
        %470 = vmatpush.msra.mxu0 0.0
        %471 = vmatpush.msra.mxu0 0.0
        %472 = vmatpush.msra.mxu0 0.0
        %473 = vmatpush.msra.mxu0 0.0
        %474 = vmatpush.msra.mxu0 0.0
        %475 = vmatpush.msra.mxu0 0.0
        %476 = vmatpush.msra.mxu0 0.0
        %477 = vmatpush.msra.mxu0 0.0
        %478 = vmatpush.msra.mxu0 %v441
        %479 = vmatmul.f32.gmra.mxu0 %v436
        %v480 = vpop.f32.mrf.mxu0
        %v481 = vadd.f32 0.0, %v480
        %482 = vdwg.mxu0
        %484 = vst [vmem:[#allocation1] ss:$2 sm:$0xff] %v427
        %v485 = vld.sshfl [vmem:[#allocation1] sm:$0xff pattern:$0x75316420]
        %v486 = vld.sshfl [vmem:[#allocation1 + $0x8] sm:$0xff pattern:$0x75316420]
        %v488 = vsel %vm434, %v426, 0
        %v490 = vsel %vm438, %v485, 0
        %v492 = vsel %vm438, %v486, 0
        %494 = vmatpush.msra.mxu0 0.0
        %495 = vmatpush.msra.mxu0 0.0
        %496 = vmatpush.msra.mxu0 0.0
        %497 = vmatpush.msra.mxu0 0.0
        %498 = vmatpush.msra.mxu0 0.0
        %499 = vmatpush.msra.mxu0 0.0
        %500 = vmatpush.msra.mxu0 0.0
        %501 = vmatpush.msra.mxu0 0.0
        %502 = vmatpush.msra.mxu0 0.0
        %503 = vmatpush.msra.mxu0 0.0
        %504 = vmatpush.msra.mxu0 0.0
        %505 = vmatpush.msra.mxu0 0.0
        %506 = vmatpush.msra.mxu0 0.0
        %507 = vmatpush.msra.mxu0 0.0
        %508 = vmatpush.msra.mxu0 0.0
        %509 = vmatpush.msra.mxu0 %v490
        %510 = vmatmul.f32.gmra.mxu0 %v488
        %v511 = vpop.f32.mrf.mxu0
        %v512 = vadd.f32 %v461, %v511
        %513 = vdwg.mxu0
        %514 = vmatpush.msra.mxu0 0.0
        %515 = vmatpush.msra.mxu0 0.0
        %516 = vmatpush.msra.mxu0 0.0
        %517 = vmatpush.msra.mxu0 0.0
        %518 = vmatpush.msra.mxu0 0.0
        %519 = vmatpush.msra.mxu0 0.0
        %520 = vmatpush.msra.mxu0 0.0
        %521 = vmatpush.msra.mxu0 0.0
        %522 = vmatpush.msra.mxu0 0.0
        %523 = vmatpush.msra.mxu0 0.0
        %524 = vmatpush.msra.mxu0 0.0
        %525 = vmatpush.msra.mxu0 0.0
        %526 = vmatpush.msra.mxu0 0.0
        %527 = vmatpush.msra.mxu0 0.0
        %528 = vmatpush.msra.mxu0 0.0
        %529 = vmatpush.msra.mxu0 %v492
        %530 = vmatmul.f32.gmra.mxu0 %v488
        %v531 = vpop.f32.mrf.mxu0
        %v532 = vadd.f32 %v481, %v531
        %533 = vdwg.mxu0
        %v534 = vld [vmem:[%s5] sm:$0xff]
        %536 = vset.pattern.permute.xlu0 0
        %537 = vperm.xlu0 %536, %v534
        %v538 = vpop.permute.xlu0 %537
        %v540 = vadd.f32 %v512, %v538
        %v541 = vadd.f32 %v532, %v538
        %v542 = vmax.f32 %v540, 0.0
        %v543 = vmax.f32 %v541, 0.0
        %v544 = vld [vmem:[%s6] sm:$0xff]
        %546 = vset.pattern.permute.xlu0 0
        %547 = vperm.xlu0 %546, %v544
        %v548 = vpop.permute.xlu0 %547
        %v550 = vmul.f32 %v542, %v548
        %v551 = vmul.f32 %v543, %v548
        %v552 = vrot.slane %v550, 4
        %v553 = vadd.f32 %v550, %v552
        %v554 = vrot.slane %v553, 2
        %v555 = vadd.f32 %v553, %v554
        %v556 = vrot.slane %v555, 1
        %v557 = vadd.f32 %v555, %v556
        %v558 = vrot.slane %v551, 4
        %v559 = vadd.f32 %v551, %v558
        %v560 = vrot.slane %v559, 2
        %v561 = vadd.f32 %v559, %v560
        %v562 = vrot.slane %v561, 1
        %v563 = vadd.f32 %v561, %v562
        %s564 = sld [smem:[#allocation2]]
        %v565 = vstv %s564
        %v566 = vadd.f32 %v557, %v565
        %v567 = vadd.f32 %v563, %v565
        %v568 = vxor.u32 %v566, 2147483648
        %v569 = vxor.u32 %v567, 2147483648
        %v570 = vmul.f32 %v568, 1.442695
        %v571 = vpow.pop %v570
        %v572 = vmul.f32 %v569, 1.442695
        %v573 = vpow.pop %v572
        %v574 = vadd.f32 %v571, 1.0
        %v575 = vadd.f32 %v573, 1.0
        %v576 = vrcp.pop %v574
        %v577 = vmul.f32 %v574, %v576
        %v578 = vsub.f32 1.0, %v577
        %v579 = vmul.f32 %v576, %v578
        %v580 = vadd.f32 %v576, %v579
        %vm581 = vweird.f32 %v574
        %vm582 = vweird.f32 %v576
        %vm583 = vmor %vm581, %vm582
        %v584 = vsel %vm583, %v576, %v580
        %v585 = vand.u32 2147483647, %v574
        %vm586 = vcmp.eq.f32.partialorder %v585, 8.507059e+37
        %v587 = vand.u32 %v574, 2147483648
        %v588 = vor.u32 1.1754944e-38, %v587
        %v589 = vsel %vm586, %v588, %v584
        %v590 = vmul.f32 1.0, %v589
        %v591 = vrcp.pop %v575
        %v592 = vmul.f32 %v575, %v591
        %v593 = vsub.f32 1.0, %v592
        %v594 = vmul.f32 %v591, %v593
        %v595 = vadd.f32 %v591, %v594
        %vm596 = vweird.f32 %v575
        %vm597 = vweird.f32 %v591
        %vm598 = vmor %vm596, %vm597
        %v599 = vsel %vm598, %v591, %v595
        %v600 = vand.u32 2147483647, %v575
        %vm601 = vcmp.eq.f32.partialorder %v600, 8.507059e+37
        %v602 = vand.u32 %v575, 2147483648
        %v603 = vor.u32 1.1754944e-38, %v602
        %v604 = vsel %vm601, %v603, %v599
        %v605 = vmul.f32 1.0, %v604
        %v606 = vld [vmem:[%s365] sm:$0xff]
        %v609 = vrot.slane %v605, 4
        %v610 = vsel %vm438, %v590, %v609
        %v612 = vmul.f32 %v606, %v610
        %613 = vst [vmem:[%s412] sm:$0xff] %v612
        %s614 = sand.u32 %s240, 1
        %s615 = scalar_lea.sflag [#allocation5], %s614
        %s616 = sand.u32 %s240, 1
        %s617 = smul.addr %s616, 8
        %s618 = scalar_lea.vmem [#allocation8], %s617
        // Predicated region
        $region61: #{tpu_custom_call.1} parent=51 // pred_check
          %p619 = pneg %p250
        $region62: #{tpu_custom_call.1} parent=51 // pred_check_branch
          %621 = sbr.rel (%p619) target = $region64
        $region63: #{tpu_custom_call.1} parent=51 // pred_region
          %s622 = smul.u32 2, %s34
          %624 = vsyncadd %s615, 0
          %s625 = smul.addr %s33, 2
          %s626 = sadd.s32 %s622, %s625
          %s627 = smul.addr %s626, 4
          %s628 = scalar_lea.hbm %s8, %s627
          %s630 = sshll.u32 %s618, 4
          %s631 = int_to_ptr.vmem [resolvable:$true] %s630
          %s632 = sshll.u32 %s628, 4
          %s633 = int_to_ptr.hbm [resolvable:$true] %s632
          %635 = dma.vmem_to_hbm [thread:$0]  %s631, 128, %s633, %s615
        $region64: #{tpu_custom_call.1} parent=51 // pred_fallthru
          _
      $region52: #{tpu_custom_call.1} parent=5 // pred_fallthru
        _
      %p636 = scmp.le.s32.totalorder 2, %s24
      // Predicated region
      $region65: #{tpu_custom_call.1} parent=5 // pred_check
        %p637 = pneg %p636
      $region66: #{tpu_custom_call.1} parent=5 // pred_check_branch
        %639 = sbr.rel (%p637) target = $region68
      $region67: #{tpu_custom_call.1} parent=5 // pred_region
        %s640 = ssub.s32 %s24, 2
        // Predicated region
        $region69: #{tpu_custom_call.1} parent=67 // pred_check
          %p641 = pneg %p256
        $region70: #{tpu_custom_call.1} parent=67 // pred_check_branch
          %643 = sbr.rel (%p641) target = $region72
        $region71: #{tpu_custom_call.1} parent=67 // pred_region
          %s644 = sand.u32 %s241, 1
          %s645 = scalar_lea.sflag [#allocation5], %s644
          %s646 = sand.u32 %s241, 1
          %s647 = smul.addr %s646, 8
          %s648 = scalar_lea.vmem [#allocation8], %s647
          %650 = dma.done %s645, 128
        $region72: #{tpu_custom_call.1} parent=67 // pred_fallthru
          _
      $region68: #{tpu_custom_call.1} parent=5 // pred_fallthru
        _
    $region6: #{tpu_custom_call.1} parent=1 // loop_footer
      %s28 = sadd.s32 1, %s24
    $region7: #{tpu_custom_call.1} parent=1 // loop_footer_branch
      %23 = sbr.rel target = $region3
    $region8: #{tpu_custom_call.1} parent=1 // loop_exit
      _
    %651 = vsyncpa [#allocation4], 1
    %s652 = scalar_lea.sflag [#allocation4], 1
    %653 = vsyncpa %s652, 1
    %654 = vsyncpa [#allocation7], 1
    %s655 = scalar_lea.sflag [#allocation7], 1
    %656 = vsyncpa %s655, 1
    %657 = vsyncpa [#allocation5], 1
    %s658 = scalar_lea.sflag [#allocation5], 1
    %659 = vsyncpa %s658, 1

</llo_original>
